<compile_context>
chip_gen: v6e
topology: v6e:2x2x1
jax: 0.10.0
libtpu: 0.0.40
codegen_flags: <defaults>
</compile_context>

<pallas_src>
import jax
import jax.numpy as jnp
from jax.experimental import pallas as pl
from jax.experimental.pallas import tpu as pltpu

NUM_MODELS = 3          # resnet34, resnet152, densenet121
NUM_CLASSES = 1000      # num_classes=1000 in the module __init__


def ensemble_kernel(x_ref, w_ref, b_ref, o_ref):
    """Fused pooled-features -> folded-ensemble-logits kernel.

    x_ref: [TB, C, H*W]  f32   activation tile (lane-dense reduce axis)
    w_ref: [C, Kp]       bf16  member-averaged weights, pre-scaled by 1/(H*W)
    b_ref: [1, Kp]       f32   member-averaged bias
    o_ref: [TB, Kp]      f32   averaged ensemble logits (padded classes)
    """
    # Spatial pooling: sum over the trailing lane-dense axis (mean's 1/(H*W)
    # is folded into w_ref), accumulated in f32.
    pooled = jnp.sum(x_ref[...], axis=-1)                      # [TB, C] f32
    # Single MXU matmul for the folded 3-member ensemble head, f32 accumulate.
    logits = jnp.dot(pooled.astype(jnp.bfloat16), w_ref[...],
                     preferred_element_type=jnp.float32)       # [TB, Kp]
    o_ref[...] = logits + b_ref[...]


def ensemble_forward(x, w_stack, b_stack, *, block_b=128):
    B, C, H, W = x.shape
    HW = H * W
    _, _, K = w_stack.shape

    # --- Algebraic fold of the 3 frozen heads + the pooling scale. ---------
    w_fold = jnp.mean(w_stack.astype(jnp.float32), axis=0) / float(HW)  # [C, K]
    b_fold = jnp.mean(b_stack.astype(jnp.float32), axis=0)              # [K]

    # --- Lane-align the class dim (1000 -> 1024). --------------------------
    Kp = ((K + 127) // 128) * 128
    w_p = jnp.pad(w_fold, ((0, 0), (0, Kp - K))).astype(jnp.bfloat16)   # [C, Kp]
    b_p = jnp.pad(b_fold, (0, Kp - K)).astype(jnp.float32).reshape(1, Kp)

    # --- Batch tiling: sublane-aligned tile, batch padded to a multiple. ---
    TB = max(8, min(block_b, ((B + 7) // 8) * 8))
    TB = (TB // 8) * 8
    Bp = ((B + TB - 1) // TB) * TB
    xr = x.astype(jnp.float32).reshape(B, C, HW)
    if Bp != B:
        xr = jnp.pad(xr, ((0, Bp - B), (0, 0), (0, 0)))

    grid = (Bp // TB,)

    # --- Explicit VMEM budget (double-buffered in/out tiles + resident W). --
    vmem_needed = (2 * TB * C * HW * 4      # double-buffered activation tile
                   + C * Kp * 2             # bf16 folded weight (resident)
                   + 2 * TB * Kp * 4        # double-buffered output tile
                   + Kp * 4)                # bias
    vmem_limit = int(min(max(vmem_needed + (8 << 20), 32 << 20), 60 << 20))

    out = pl.pallas_call(
        ensemble_kernel,
        out_shape=jax.ShapeDtypeStruct((Bp, Kp), jnp.float32),
        grid=grid,
        in_specs=[
            pl.BlockSpec((TB, C, HW), lambda i: (i, 0, 0)),
            pl.BlockSpec((C, Kp), lambda i: (0, 0)),   # weight: VMEM-resident
            pl.BlockSpec((1, Kp), lambda i: (0, 0)),   # bias: VMEM-resident
        ],
        out_specs=pl.BlockSpec((TB, Kp), lambda i: (i, 0)),
        compiler_params=pltpu.CompilerParams(
            dimension_semantics=("parallel",),         # shard batch over TCs
            vmem_limit_bytes=vmem_limit),
    )(xr, w_p, b_p)

    return out[:B, :K]


def reference_forward(x, w_stack, b_stack):
    """Pure-JAX f32 reference of the original (per-member) ensemble math."""
    pooled = jnp.mean(x.astype(jnp.float32), axis=(2, 3))      # [B, C]
    logits = 0.0
    for m in range(NUM_MODELS):
        logits = logits + pooled @ w_stack[m] + b_stack[m][None, :]
    return logits / NUM_MODELS


if __name__ == "__main__":
    # Small, deterministic example shapes consistent with an image batch.
    B, C, H, W = 2, 4, 16, 16

    key = jax.random.PRNGKey(0)
    kx, kw, kb = jax.random.split(key, 3)

    x = jax.random.normal(kx, (B, C, H, W), dtype=jnp.float32)
    # Deterministic synthetic per-member classifier parameters.
    w_stack = (jax.random.normal(kw, (NUM_MODELS, C, NUM_CLASSES),
                                 dtype=jnp.float32) * 0.02)
    b_stack = (jax.random.normal(kb, (NUM_MODELS, NUM_CLASSES),
                                 dtype=jnp.float32) * 0.01)

    out = ensemble_forward(x, w_stack, b_stack)
    out = jax.block_until_ready(out)

    ref = reference_forward(x, w_stack, b_stack)
    assert out.shape == (B, NUM_CLASSES)
    # bf16 weights/activations at the MXU with f32 accumulation -> loose tol.
    assert jnp.allclose(out, ref, atol=2e-3, rtol=1e-2), "mismatch vs reference"

    print("KERNEL_OK")
</pallas_src>

<mosaic_0001>
module attributes {stable_mosaic.version = 11 : i64} {
  func.func @ensemble_kernel(%arg0: i32, %arg1: memref<8x4x256xf32, #tpu.memory_space<vmem>>, %arg2: memref<4x1024xbf16, #tpu.memory_space<vmem>>, %arg3: memref<1x1024xf32, #tpu.memory_space<vmem>>, %arg4: memref<8x1024xf32, #tpu.memory_space<vmem>>) attributes {dimension_semantics = [#tpu.dimension_semantics<parallel>], iteration_bounds = array<i64: 1>, scalar_prefetch = 0 : i64, scratch_operands = 0 : i64, tpu.core_type = #tpu.core_type<tc>, window_params = [{transform_indices = @transform_0, window_bounds = array<i64: 8, 4, 256>}, {pipeline_mode = #tpu.pipeline_mode<synchronous>, transform_indices = @transform_1, window_bounds = array<i64: 4, 1024>}, {pipeline_mode = #tpu.pipeline_mode<synchronous>, transform_indices = @transform_2, window_bounds = array<i64: 1, 1024>}, {transform_indices = @transform_3, window_bounds = array<i64: 8, 1024>}]} {
    %c0 = arith.constant 0 : index
    %c0_0 = arith.constant 0 : index
    %c0_1 = arith.constant 0 : index
    %0 = vector.load %arg1[%c0, %c0_0, %c0_1] : memref<8x4x256xf32, #tpu.memory_space<vmem>>, vector<8x4x256xf32>
    %cst = arith.constant dense<0.000000e+00> : vector<8x4xf32>
    %1 = vector.multi_reduction <add>, %0, %cst [2] : vector<8x4x256xf32> to vector<8x4xf32>
    %2 = arith.truncf %1 : vector<8x4xf32> to vector<8x4xbf16>
    %c0_2 = arith.constant 0 : index
    %c0_3 = arith.constant 0 : index
    %3 = vector.load %arg2[%c0_2, %c0_3] : memref<4x1024xbf16, #tpu.memory_space<vmem>>, vector<4x1024xbf16>
    %cst_4 = arith.constant dense<0.000000e+00> : vector<8x1024xf32>
    %4 = tpu.matmul %2, %3, %cst_4 {dimension_numbers = #tpu.dot_dimension_numbers<[1], [0], [0], [1], [0, 0, 1, 1], [], []>} : vector<8x4xbf16>, vector<4x1024xbf16>, vector<8x1024xf32> -> vector<8x1024xf32>
    %c0_5 = arith.constant 0 : index
    %c0_6 = arith.constant 0 : index
    %5 = vector.load %arg3[%c0_5, %c0_6] : memref<1x1024xf32, #tpu.memory_space<vmem>>, vector<1x1024xf32>
    %6 = vector.broadcast %5 : vector<1x1024xf32> to vector<8x1024xf32>
    %7 = arith.addf %4, %6 : vector<8x1024xf32>
    %c0_7 = arith.constant 0 : index
    %c0_8 = arith.constant 0 : index
    %8 = vector.load %arg4[%c0_7, %c0_8] : memref<8x1024xf32, #tpu.memory_space<vmem>>, vector<8x1024xf32>
    tpu.vector_store %arg4[%c0_7, %c0_8], %7 {strides = array<i32>} : memref<8x1024xf32, #tpu.memory_space<vmem>>, vector<8x1024xf32>,
    return
  }
  func.func @transform_0(%arg0: i32) -> (i32, i32, i32) {
    %c0_i32 = arith.constant 0 : i32
    %c0_i32_0 = arith.constant 0 : i32
    %c0_i32_1 = arith.constant 0 : i32
    return %arg0, %c0_i32, %c0_i32_0 : i32, i32, i32
  }
  func.func @transform_1(%arg0: i32) -> (i32, i32) {
    %c0_i32 = arith.constant 0 : i32
    %c0_i32_0 = arith.constant 0 : i32
    %c0_i32_1 = arith.constant 0 : i32
    return %c0_i32, %c0_i32_0 : i32, i32
  }
  func.func @transform_2(%arg0: i32) -> (i32, i32) {
    %c0_i32 = arith.constant 0 : i32
    %c0_i32_0 = arith.constant 0 : i32
    %c0_i32_1 = arith.constant 0 : i32
    return %c0_i32, %c0_i32_0 : i32, i32
  }
  func.func @transform_3(%arg0: i32) -> (i32, i32) {
    %c0_i32 = arith.constant 0 : i32
    %c0_i32_0 = arith.constant 0 : i32
    return %arg0, %c0_i32 : i32, i32
  }
}

</mosaic_0001>

<llo_original>
// kernel: tpu_custom_call.1
$region0: #{tpu_custom_call.1}
  #allocation0 [shape = 'u32[]', space=smem, size = 0x4, offset = 0x4, fixed_abs, tag = 'smem constant byte address 0x4 - core index']
  #allocation1 [shape = 'u32[144,128]{1,0:T(1,128)}', space=vmem, size = 0x12000, scoped, tag = 'internal scratch']
  %s0 = inlined_call_operand.hbm [shape: f32[8,4,256], index: 0, kind: input, shape index: {}]
  %s1 = inlined_call_operand.hbm [shape: bf16[4,1024], index: 1, kind: input, shape index: {}]
  %s2 = inlined_call_operand.hbm [shape: f32[1,1024], index: 2, kind: input, shape index: {}]
  %s3 = inlined_call_operand.hbm [shape: f32[8,1024], index: 3, kind: output, shape index: {}]
  %s4 = sld [smem:[#allocation0]]
  $region34: #{tpu_custom_call.1} parent=0
    _
  %s6 = ssub.s32 1, %s4
  %s7 = scalar_select 0, %s6, %s4
  $region1: #{tpu_custom_call.1} parent=0
    #allocation2 [shape = 'u8[32768]{0}', space=vmem, size = 0x8000, scoped, tag = 'input window, operand 0, single buffered']
    #allocation3 [shape = 's32[1]{0}', space=sflag, size = 0x4, scoped, tag = 'scoped memory for tpu_custom_call.1']
    #allocation4 [shape = 's32[1]{0}', space=sflag, size = 0x4, scoped, tag = 'scoped memory for tpu_custom_call.1']
    #allocation5 [shape = 'u8[8192]{0}', space=vmem, size = 0x2000, scoped, tag = 'input window, operand 1, single buffered']
    #allocation6 [shape = 's32[1]{0}', space=sflag, size = 0x4, scoped, tag = 'scoped memory for tpu_custom_call.1']
    #allocation7 [shape = 'u8[4096]{0}', space=vmem, size = 0x1000, scoped, tag = 'input window, operand 2, single buffered']
    #allocation8 [shape = 'u8[32768]{0}', space=vmem, size = 0x8000, scoped, tag = 'output window, operand 0, single buffered']
    %8 = vsyncpa [#allocation3], 0
    %9 = vsyncpa [#allocation6], 0
    %10 = vsyncpa [#allocation4], 0
    // Predicated region
    $region2: #{tpu_custom_call.1} parent=1 // pred_check
      _
    $region3: #{tpu_custom_call.1} parent=1 // pred_check_branch
      %12 = sbr.rel (0) target = $region5
    $region4: #{tpu_custom_call.1} parent=1 // pred_region
      %s14 = ssub.s32 1024, 1024
      %15 = vsyncadd [#allocation3], %s14
      %s16 = sshll.u32 [#allocation2], 4
      %s17 = int_to_ptr.vmem [resolvable:$true] %s16
      %22 = dma.hbm_to_vmem [thread:$0]  %s0, 1024, %s17, [#allocation3], 128, 128, 8
    $region5: #{tpu_custom_call.1} parent=1 // pred_fallthru
      _
    // Predicated region
    $region6: #{tpu_custom_call.1} parent=1 // pred_check
      _
    $region7: #{tpu_custom_call.1} parent=1 // pred_check_branch
      %24 = sbr.rel (0) target = $region9
    $region8: #{tpu_custom_call.1} parent=1 // pred_region
      %s26 = ssub.s32 256, 256
      %27 = vsyncadd [#allocation6], %s26
      %s29 = sshll.u32 [#allocation5], 4
      %s30 = int_to_ptr.vmem [resolvable:$true] %s29
      %32 = dma.hbm_to_vmem [thread:$0]  %s1, 256, %s30, [#allocation6]
    $region9: #{tpu_custom_call.1} parent=1 // pred_fallthru
      _
    // Predicated region
    $region10: #{tpu_custom_call.1} parent=1 // pred_check
      _
    $region11: #{tpu_custom_call.1} parent=1 // pred_check_branch
      %34 = sbr.rel (0) target = $region13
    $region12: #{tpu_custom_call.1} parent=1 // pred_region
      %s36 = ssub.s32 128, 128
      %37 = vsyncadd [#allocation6], %s36
      %s39 = sshll.u32 [#allocation7], 4
      %s40 = int_to_ptr.vmem [resolvable:$true] %s39
      %42 = dma.hbm_to_vmem [thread:$0]  %s2, 128, %s40, [#allocation6]
    $region13: #{tpu_custom_call.1} parent=1 // pred_fallthru
      _
    // Predicated region
    $region14: #{tpu_custom_call.1} parent=1 // pred_check
      _
    $region15: #{tpu_custom_call.1} parent=1 // pred_check_branch
      %44 = sbr.rel (0) target = $region17
    $region16: #{tpu_custom_call.1} parent=1 // pred_region
      %45 = dma.done [#allocation3], 1024
    $region17: #{tpu_custom_call.1} parent=1 // pred_fallthru
      _
    // Predicated region
    $region18: #{tpu_custom_call.1} parent=1 // pred_check
      _
    $region19: #{tpu_custom_call.1} parent=1 // pred_check_branch
      %47 = sbr.rel (0) target = $region21
    $region20: #{tpu_custom_call.1} parent=1 // pred_region
      %48 = dma.done [#allocation6], 256
    $region21: #{tpu_custom_call.1} parent=1 // pred_fallthru
      _
    // Predicated region
    $region22: #{tpu_custom_call.1} parent=1 // pred_check
      _
    $region23: #{tpu_custom_call.1} parent=1 // pred_check_branch
      %50 = sbr.rel (0) target = $region25
    $region24: #{tpu_custom_call.1} parent=1 // pred_region
      %51 = dma.done [#allocation6], 128
    $region25: #{tpu_custom_call.1} parent=1 // pred_fallthru
      _
    %v53 = vld [vmem:[#allocation2] sm:$0xff]
    %v54 = vld [vmem:[#allocation2 + $0x8] sm:$0xff]
    %v55 = vld [vmem:[#allocation2 + $0x10] sm:$0xff]
    %v56 = vld [vmem:[#allocation2 + $0x18] sm:$0xff]
    %v57 = vld [vmem:[#allocation2 + $0x20] sm:$0xff]
    %v58 = vld [vmem:[#allocation2 + $0x28] sm:$0xff]
    %v59 = vld [vmem:[#allocation2 + $0x30] sm:$0xff]
    %v60 = vld [vmem:[#allocation2 + $0x38] sm:$0xff]
    %v69 = vcombine.high %v53, %v53
    %v70 = vcombine.high %v54, %v54
    %v71 = vcombine.high %v55, %v55
    %v72 = vcombine.high %v56, %v56
    %v73 = vcombine.high %v57, %v57
    %v74 = vcombine.high %v58, %v58
    %v75 = vcombine.high %v59, %v59
    %v76 = vcombine.high %v60, %v60
    %vm85 = vcmask 1043456
    %v86 = vsel %vm85, %v53, 0.0
    %v87 = vsel %vm85, %v69, 0.0
    %v88 = vadd.f32 %v86, %v87
    %89 = vadd.xlane.f32.xlu0 %v88
    %v90 = vpop.xlane.xlu0 %89
    %v91 = vsel %vm85, %v54, 0.0
    %v92 = vsel %vm85, %v70, 0.0
    %v93 = vadd.f32 %v91, %v92
    %94 = vadd.xlane.f32.xlu0 %v93
    %v95 = vpop.xlane.xlu0 %94
    %v96 = vsel %vm85, %v55, 0.0
    %v97 = vsel %vm85, %v71, 0.0
    %v98 = vadd.f32 %v96, %v97
    %99 = vadd.xlane.f32.xlu0 %v98
    %v100 = vpop.xlane.xlu0 %99
    %v101 = vsel %vm85, %v56, 0.0
    %v102 = vsel %vm85, %v72, 0.0
    %v103 = vadd.f32 %v101, %v102
    %104 = vadd.xlane.f32.xlu0 %v103
    %v105 = vpop.xlane.xlu0 %104
    %v106 = vsel %vm85, %v57, 0.0
    %v107 = vsel %vm85, %v73, 0.0
    %v108 = vadd.f32 %v106, %v107
    %109 = vadd.xlane.f32.xlu0 %v108
    %v110 = vpop.xlane.xlu0 %109
    %v111 = vsel %vm85, %v58, 0.0
    %v112 = vsel %vm85, %v74, 0.0
    %v113 = vadd.f32 %v111, %v112
    %114 = vadd.xlane.f32.xlu0 %v113
    %v115 = vpop.xlane.xlu0 %114
    %v116 = vsel %vm85, %v59, 0.0
    %v117 = vsel %vm85, %v75, 0.0
    %v118 = vadd.f32 %v116, %v117
    %119 = vadd.xlane.f32.xlu0 %v118
    %v120 = vpop.xlane.xlu0 %119
    %v121 = vsel %vm85, %v60, 0.0
    %v122 = vsel %vm85, %v76, 0.0
    %v123 = vadd.f32 %v121, %v122
    %124 = vadd.xlane.f32.xlu0 %v123
    %v125 = vpop.xlane.xlu0 %124
    %v126 = vpack.c.bf16 %v90, %v90
    %v127 = vpack.c.bf16 %v95, %v95
    %v128 = vpack.c.bf16 %v100, %v100
    %v129 = vpack.c.bf16 %v105, %v105
    %v130 = vpack.c.bf16 %v110, %v110
    %v131 = vpack.c.bf16 %v115, %v115
    %v132 = vpack.c.bf16 %v120, %v120
    %v133 = vpack.c.bf16 %v125, %v125
    %v134 = vld [vmem:[#allocation5] sm:$0xff]
    %v135 = vld [vmem:[#allocation5 + $0x8] sm:$0xff]
    %v136 = vld [vmem:[#allocation7] sm:$0xff]
    %v138 = vlaneseq
    %v139 = vshrl.u32 %v138, 7
    %v140 = vsub.s32 0, %v139
    %v141 = vrot.slane %v136, %v140
    %v142 = vlaneseq
    %v143 = vshrl.u32 %v142, 7
    %v144 = vsub.s32 1, %v143
    %v145 = vrot.slane %v136, %v144
    %v146 = vlaneseq
    %v147 = vshrl.u32 %v146, 7
    %v148 = vsub.s32 2, %v147
    %v149 = vrot.slane %v136, %v148
    %v150 = vlaneseq
    %v151 = vshrl.u32 %v150, 7
    %v152 = vsub.s32 3, %v151
    %v153 = vrot.slane %v136, %v152
    %v154 = vlaneseq
    %v155 = vshrl.u32 %v154, 7
    %v156 = vsub.s32 4, %v155
    %v157 = vrot.slane %v136, %v156
    %v158 = vlaneseq
    %v159 = vshrl.u32 %v158, 7
    %v160 = vsub.s32 5, %v159
    %v161 = vrot.slane %v136, %v160
    %v162 = vlaneseq
    %v163 = vshrl.u32 %v162, 7
    %v164 = vsub.s32 6, %v163
    %v165 = vrot.slane %v136, %v164
    %v166 = vlaneseq
    %v167 = vshrl.u32 %v166, 7
    %v168 = vsub.s32 7, %v167
    %v169 = vrot.slane %v136, %v168
    %v186 = vunpack.c.l.b16 %v126
    %v187 = vunpack.c.l.b16 %v127
    %v188 = vunpack.c.l.b16 %v128
    %v189 = vunpack.c.l.b16 %v129
    %v190 = vunpack.c.l.b16 %v130
    %v191 = vunpack.c.l.b16 %v131
    %v192 = vunpack.c.l.b16 %v132
    %v193 = vunpack.c.l.b16 %v133
    %v194 = vlaneseq
    %v195 = vand.u32 %v194, 127
    %v196 = vlaneseq
    %v197 = vshrl.u32 %v196, 7
    %v198 = vsub.s32 %v195, %v197
    %v199 = vrot.slane %v186, %v198
    %v200 = vlaneseq
    %v201 = vshrl.u32 %v200, 7
    %v202 = vsub.s32 %v195, %v201
    %v203 = vrot.slane %v187, %v202
    %v204 = vlaneseq
    %v205 = vshrl.u32 %v204, 7
    %v206 = vsub.s32 %v195, %v205
    %v207 = vrot.slane %v188, %v206
    %v208 = vlaneseq
    %v209 = vshrl.u32 %v208, 7
    %v210 = vsub.s32 %v195, %v209
    %v211 = vrot.slane %v189, %v210
    %v212 = vlaneseq
    %v213 = vshrl.u32 %v212, 7
    %v214 = vsub.s32 %v195, %v213
    %v215 = vrot.slane %v190, %v214
    %v216 = vlaneseq
    %v217 = vshrl.u32 %v216, 7
    %v218 = vsub.s32 %v195, %v217
    %v219 = vrot.slane %v191, %v218
    %v220 = vlaneseq
    %v221 = vshrl.u32 %v220, 7
    %v222 = vsub.s32 %v195, %v221
    %v223 = vrot.slane %v192, %v222
    %v224 = vlaneseq
    %v225 = vshrl.u32 %v224, 7
    %v226 = vsub.s32 %v195, %v225
    %v227 = vrot.slane %v193, %v226
    %vm228 = vcmask 1041409
    %v229 = vsel %vm228, %v203, %v199
    %vm230 = vcmask 1042434
    %v231 = vsel %vm230, %v207, %v229
    %vm232 = vcmask 1043459
    %v233 = vsel %vm232, %v211, %v231
    %vm234 = vcmask 1044484
    %v235 = vsel %vm234, %v215, %v233
    %vm236 = vcmask 1045509
    %v237 = vsel %vm236, %v219, %v235
    %vm238 = vcmask 1046534
    %v239 = vsel %vm238, %v223, %v237
    %vm240 = vcmask 1047559
    %v241 = vsel %vm240, %v227, %v239
    %v242 = vpack.c.b16 %v241, %v241
    %v245 = vcombine.high %v134, %v134
    %v247 = vunpack.c.l.s4 1983009808
    %v248 = vunpack.c.0.s8 %v247
    %v249 = vlaneseq
    %v250 = vshrl.u32 %v249, 7
    %v251 = vsub.s32 %v248, %v250
    %v252 = vrot.slane %v134, %v251
    %v254 = vunpack.c.l.s4 1983009808
    %v255 = vunpack.c.0.s8 %v254
    %v256 = vlaneseq
    %v257 = vshrl.u32 %v256, 7
    %v258 = vsub.s32 %v255, %v257
    %v259 = vrot.slane %v245, %v258
    %v260 = vcombine.high %v252, %v252
    %v261 = vcombine.high %v259, %v259
    %v262 = vcombine.high %v135, %v135
    %v264 = vunpack.c.l.s4 1983009808
    %v265 = vunpack.c.0.s8 %v264
    %v266 = vlaneseq
    %v267 = vshrl.u32 %v266, 7
    %v268 = vsub.s32 %v265, %v267
    %v269 = vrot.slane %v135, %v268
    %v271 = vunpack.c.l.s4 1983009808
    %v272 = vunpack.c.0.s8 %v271
    %v273 = vlaneseq
    %v274 = vshrl.u32 %v273, 7
    %v275 = vsub.s32 %v272, %v274
    %v276 = vrot.slane %v262, %v275
    %v277 = vcombine.high %v269, %v269
    %v278 = vcombine.high %v276, %v276
    %vm279 = vcmask 31744
    %v281 = vsel %vm279, %v242, 0
    %vm283 = vcmask 1041408
    %v285 = vsel %vm283, %v252, 0
    %v288 = vsel %vm283, %v260, 0
    %v291 = vsel %vm283, %v259, 0
    %v294 = vsel %vm283, %v261, 0
    %v297 = vsel %vm283, %v269, 0
    %v300 = vsel %vm283, %v277, 0
    %v303 = vsel %vm283, %v276, 0
    %v306 = vsel %vm283, %v278, 0
    %308 = vmatprep.subr.bf16.mxu0 0
    %309 = vmatpush1.bf16.msra.mxu0 0
    %310 = vmatprep.subr.bf16.mxu0 0
    %311 = vmatpush1.bf16.msra.mxu0 0
    %312 = vmatprep.subr.bf16.mxu0 0
    %313 = vmatpush1.bf16.msra.mxu0 0
    %314 = vmatprep.subr.bf16.mxu0 0
    %315 = vmatpush1.bf16.msra.mxu0 0
    %316 = vmatprep.subr.bf16.mxu0 0
    %317 = vmatpush1.bf16.msra.mxu0 0
    %318 = vmatprep.subr.bf16.mxu0 0
    %319 = vmatpush1.bf16.msra.mxu0 0
    %320 = vmatprep.subr.bf16.mxu0 0
    %321 = vmatpush1.bf16.msra.mxu0 0
    %322 = vmatprep.subr.bf16.mxu0 %v288
    %323 = vmatpush1.bf16.msra.mxu0 %v285
    %324 = vmatprep.subr.bf16.mxu0 0
    %325 = vmatpush2.bf16.msra.mxu0 0
    %326 = vmatprep.subr.bf16.mxu0 0
    %327 = vmatpush2.bf16.msra.mxu0 0
    %328 = vmatprep.subr.bf16.mxu0 0
    %329 = vmatpush2.bf16.msra.mxu0 0
    %330 = vmatprep.subr.bf16.mxu0 0
    %331 = vmatpush2.bf16.msra.mxu0 0
    %332 = vmatprep.subr.bf16.mxu0 0
    %333 = vmatpush2.bf16.msra.mxu0 0
    %334 = vmatprep.subr.bf16.mxu0 0
    %335 = vmatpush2.bf16.msra.mxu0 0
    %336 = vmatprep.subr.bf16.mxu0 0
    %337 = vmatpush2.bf16.msra.mxu0 0
    %338 = vmatprep.subr.bf16.mxu0 0
    %339 = vmatpush2.bf16.msra.mxu0 0
    %340 = vmatprep.mubr.bf16.mxu0 0
    %341 = vmatmul.mubr.bf16.gmra.mxu0 %v281
    %v342 = vpop.f32.mrf.mxu0
    %v343 = vadd.f32 %v141, %v342
    %v344 = vpop.f32.mrf.mxu0
    %v345 = vadd.f32 %v145, %v344
    %v346 = vpop.f32.mrf.mxu0
    %v347 = vpop.f32.mrf.mxu0
    %348 = vdwg.mxu0
    %349 = vmatprep.subr.bf16.mxu0 0
    %350 = vmatpush1.bf16.msra.mxu0 0
    %351 = vmatprep.subr.bf16.mxu0 0
    %352 = vmatpush1.bf16.msra.mxu0 0
    %353 = vmatprep.subr.bf16.mxu0 0
    %354 = vmatpush1.bf16.msra.mxu0 0
    %355 = vmatprep.subr.bf16.mxu0 0
    %356 = vmatpush1.bf16.msra.mxu0 0
    %357 = vmatprep.subr.bf16.mxu0 0
    %358 = vmatpush1.bf16.msra.mxu0 0
    %359 = vmatprep.subr.bf16.mxu0 0
    %360 = vmatpush1.bf16.msra.mxu0 0
    %361 = vmatprep.subr.bf16.mxu0 0
    %362 = vmatpush1.bf16.msra.mxu0 0
    %363 = vmatprep.subr.bf16.mxu0 %v294
    %364 = vmatpush1.bf16.msra.mxu0 %v291
    %365 = vmatprep.subr.bf16.mxu0 0
    %366 = vmatpush2.bf16.msra.mxu0 0
    %367 = vmatprep.subr.bf16.mxu0 0
    %368 = vmatpush2.bf16.msra.mxu0 0
    %369 = vmatprep.subr.bf16.mxu0 0
    %370 = vmatpush2.bf16.msra.mxu0 0
    %371 = vmatprep.subr.bf16.mxu0 0
    %372 = vmatpush2.bf16.msra.mxu0 0
    %373 = vmatprep.subr.bf16.mxu0 0
    %374 = vmatpush2.bf16.msra.mxu0 0
    %375 = vmatprep.subr.bf16.mxu0 0
    %376 = vmatpush2.bf16.msra.mxu0 0
    %377 = vmatprep.subr.bf16.mxu0 0
    %378 = vmatpush2.bf16.msra.mxu0 0
    %379 = vmatprep.subr.bf16.mxu0 0
    %380 = vmatpush2.bf16.msra.mxu0 0
    %381 = vmatprep.mubr.bf16.mxu0 0
    %382 = vmatmul.mubr.bf16.gmra.mxu0 %v281
    %v383 = vpop.f32.mrf.mxu0
    %v384 = vadd.f32 %v149, %v383
    %v385 = vpop.f32.mrf.mxu0
    %v386 = vadd.f32 %v153, %v385
    %v387 = vpop.f32.mrf.mxu0
    %v388 = vpop.f32.mrf.mxu0
    %389 = vdwg.mxu0
    %390 = vmatprep.subr.bf16.mxu0 0
    %391 = vmatpush1.bf16.msra.mxu0 0
    %392 = vmatprep.subr.bf16.mxu0 0
    %393 = vmatpush1.bf16.msra.mxu0 0
    %394 = vmatprep.subr.bf16.mxu0 0
    %395 = vmatpush1.bf16.msra.mxu0 0
    %396 = vmatprep.subr.bf16.mxu0 0
    %397 = vmatpush1.bf16.msra.mxu0 0
    %398 = vmatprep.subr.bf16.mxu0 0
    %399 = vmatpush1.bf16.msra.mxu0 0
    %400 = vmatprep.subr.bf16.mxu0 0
    %401 = vmatpush1.bf16.msra.mxu0 0
    %402 = vmatprep.subr.bf16.mxu0 0
    %403 = vmatpush1.bf16.msra.mxu0 0
    %404 = vmatprep.subr.bf16.mxu0 %v300
    %405 = vmatpush1.bf16.msra.mxu0 %v297
    %406 = vmatprep.subr.bf16.mxu0 0
    %407 = vmatpush2.bf16.msra.mxu0 0
    %408 = vmatprep.subr.bf16.mxu0 0
    %409 = vmatpush2.bf16.msra.mxu0 0
    %410 = vmatprep.subr.bf16.mxu0 0
    %411 = vmatpush2.bf16.msra.mxu0 0
    %412 = vmatprep.subr.bf16.mxu0 0
    %413 = vmatpush2.bf16.msra.mxu0 0
    %414 = vmatprep.subr.bf16.mxu0 0
    %415 = vmatpush2.bf16.msra.mxu0 0
    %416 = vmatprep.subr.bf16.mxu0 0
    %417 = vmatpush2.bf16.msra.mxu0 0
    %418 = vmatprep.subr.bf16.mxu0 0
    %419 = vmatpush2.bf16.msra.mxu0 0
    %420 = vmatprep.subr.bf16.mxu0 0
    %421 = vmatpush2.bf16.msra.mxu0 0
    %422 = vmatprep.mubr.bf16.mxu0 0
    %423 = vmatmul.mubr.bf16.gmra.mxu0 %v281
    %v424 = vpop.f32.mrf.mxu0
    %v425 = vadd.f32 %v157, %v424
    %v426 = vpop.f32.mrf.mxu0
    %v427 = vadd.f32 %v161, %v426
    %v428 = vpop.f32.mrf.mxu0
    %v429 = vpop.f32.mrf.mxu0
    %430 = vdwg.mxu0
    %431 = vmatprep.subr.bf16.mxu0 0
    %432 = vmatpush1.bf16.msra.mxu0 0
    %433 = vmatprep.subr.bf16.mxu0 0
    %434 = vmatpush1.bf16.msra.mxu0 0
    %435 = vmatprep.subr.bf16.mxu0 0
    %436 = vmatpush1.bf16.msra.mxu0 0
    %437 = vmatprep.subr.bf16.mxu0 0
    %438 = vmatpush1.bf16.msra.mxu0 0
    %439 = vmatprep.subr.bf16.mxu0 0
    %440 = vmatpush1.bf16.msra.mxu0 0
    %441 = vmatprep.subr.bf16.mxu0 0
    %442 = vmatpush1.bf16.msra.mxu0 0
    %443 = vmatprep.subr.bf16.mxu0 0
    %444 = vmatpush1.bf16.msra.mxu0 0
    %445 = vmatprep.subr.bf16.mxu0 %v306
    %446 = vmatpush1.bf16.msra.mxu0 %v303
    %447 = vmatprep.subr.bf16.mxu0 0
    %448 = vmatpush2.bf16.msra.mxu0 0
    %449 = vmatprep.subr.bf16.mxu0 0
    %450 = vmatpush2.bf16.msra.mxu0 0
    %451 = vmatprep.subr.bf16.mxu0 0
    %452 = vmatpush2.bf16.msra.mxu0 0
    %453 = vmatprep.subr.bf16.mxu0 0
    %454 = vmatpush2.bf16.msra.mxu0 0
    %455 = vmatprep.subr.bf16.mxu0 0
    %456 = vmatpush2.bf16.msra.mxu0 0
    %457 = vmatprep.subr.bf16.mxu0 0
    %458 = vmatpush2.bf16.msra.mxu0 0
    %459 = vmatprep.subr.bf16.mxu0 0
    %460 = vmatpush2.bf16.msra.mxu0 0
    %461 = vmatprep.subr.bf16.mxu0 0
    %462 = vmatpush2.bf16.msra.mxu0 0
    %463 = vmatprep.mubr.bf16.mxu0 0
    %464 = vmatmul.mubr.bf16.gmra.mxu0 %v281
    %v465 = vpop.f32.mrf.mxu0
    %v466 = vadd.f32 %v165, %v465
    %v467 = vpop.f32.mrf.mxu0
    %v468 = vadd.f32 %v169, %v467
    %v469 = vpop.f32.mrf.mxu0
    %v470 = vpop.f32.mrf.mxu0
    %471 = vdwg.mxu0
    %472 = vst [vmem:[#allocation8] sm:$0xff] %v343
    %473 = vst [vmem:[#allocation8 + $0x8] sm:$0xff] %v345
    %474 = vst [vmem:[#allocation8 + $0x10] sm:$0xff] %v384
    %475 = vst [vmem:[#allocation8 + $0x18] sm:$0xff] %v386
    %476 = vst [vmem:[#allocation8 + $0x20] sm:$0xff] %v425
    %477 = vst [vmem:[#allocation8 + $0x28] sm:$0xff] %v427
    %478 = vst [vmem:[#allocation8 + $0x30] sm:$0xff] %v466
    %479 = vst [vmem:[#allocation8 + $0x38] sm:$0xff] %v468
    // Predicated region
    $region26: #{tpu_custom_call.1} parent=1 // pred_check
      _
    $region27: #{tpu_custom_call.1} parent=1 // pred_check_branch
      %481 = sbr.rel (0) target = $region29
    $region28: #{tpu_custom_call.1} parent=1 // pred_region
      %s483 = ssub.s32 1024, 1024
      %484 = vsyncadd [#allocation4], %s483
      %s486 = sshll.u32 [#allocation8], 4
      %s487 = int_to_ptr.vmem [resolvable:$true] %s486
      %489 = dma.vmem_to_hbm [thread:$0]  %s487, 1024, %s3, [#allocation4]
    $region29: #{tpu_custom_call.1} parent=1 // pred_fallthru
      _
    // Predicated region
    $region30: #{tpu_custom_call.1} parent=1 // pred_check
      _
    $region31: #{tpu_custom_call.1} parent=1 // pred_check_branch
      %491 = sbr.rel (0) target = $region33
    $region32: #{tpu_custom_call.1} parent=1 // pred_region
      %492 = dma.done [#allocation4], 1024
    $region33: #{tpu_custom_call.1} parent=1 // pred_fallthru
      _
    %493 = vsyncpa [#allocation3], 1
    %494 = vsyncpa [#allocation6], 1
    %495 = vsyncpa [#allocation4], 1

</llo_original>
